<compile_context>
chip_gen: v5e
topology: v5e:2x2
jax: 0.10.0
libtpu: 0.0.40
codegen_flags: <defaults>
</compile_context>

<pallas_src>
import functools

import jax
import jax.numpy as jnp
from jax.experimental import pallas as pl
from jax.experimental.pallas import tpu as pltpu


_EPS = 1e-12  # matches torch.nn.functional.normalize


def _round_up(x, m):
    return ((x + m - 1) // m) * m


def _normalize_rows(x):
    # x / max(||x||, eps) == x * rsqrt(max(sum(x*x), eps^2))   (EUP rsqrt path)
    sumsq = jnp.sum(x * x, axis=-1, keepdims=True)
    return x * jax.lax.rsqrt(jnp.maximum(sumsq, _EPS * _EPS))


def _vmem_capacity_bytes():
    # Generation-derived budget (v5e/v6e: 128 MiB; v7x: 64 MiB per TensorCore).
    try:
        info = pltpu.get_tpu_info()
        cap = int(getattr(info, "vmem_capacity_bytes", 0) or 0)
        if cap > 0:
            return cap
    except Exception:
        pass
    return 64 << 20  # conservative fallback (v7x per-core VMEM)


def _bidir_lse_kernel(
    aq_ref,     # (Bp, Dp)      anchor[:B]      queries (forward CE,  d == 0)
    cq_ref,     # (Bp, Dp)      candidates[:B]  queries (backward CE, d == 1)
    akeys_ref,  # (tile_a, Dp)  anchor key tile      (backward CE keys)
    ckeys_ref,  # (tile_c, Dp)  candidate key tile   (forward CE keys)
    lse_ref,    # (1, Bp, 1)    per-direction logsumexp output block
    qn_ref,     # (Bp, Dp)      VMEM scratch: normalized queries for direction d
    m_ref,      # (Bp, 1)       VMEM scratch: running max
    l_ref,      # (Bp, 1)       VMEM scratch: running sum-exp
    *, n_anchor, n_cand, n_a_tiles, n_c_tiles, scale,
):
    d = pl.program_id(0)        # 0: anchor->candidates CE, 1: candidates->anchors CE
    k = pl.program_id(1)        # key-tile step (online-softmax reduction axis)
    n_steps = pl.num_programs(1)

    @pl.when(k == 0)
    def _init_acc():
        m_ref[...] = jnp.full(m_ref.shape, -jnp.inf, jnp.float32)
        l_ref[...] = jnp.zeros(l_ref.shape, jnp.float32)

    # Loop-invariant query normalization: done once per direction, in f32,
    # stored in the keys' native dtype so the matmul runs at native precision.
    @pl.when(jnp.logical_and(k == 0, d == 0))
    def _init_fwd_queries():
        qn = _normalize_rows(aq_ref[...].astype(jnp.float32))
        qn_ref[...] = qn.astype(qn_ref.dtype)

    @pl.when(jnp.logical_and(k == 0, d == 1))
    def _init_bwd_queries():
        qn = _normalize_rows(cq_ref[...].astype(jnp.float32))
        qn_ref[...] = qn.astype(qn_ref.dtype)

    def online_update(keys_ref, valid_count):
        tile = keys_ref.shape[0]
        # Key norms in f32; normalized tile cast back to the native key dtype so
        # bf16 encoder outputs hit the native bf16 MXU path.
        kf = keys_ref[...].astype(jnp.float32)
        inv = jax.lax.rsqrt(
            jnp.maximum(jnp.sum(kf * kf, axis=-1, keepdims=True), _EPS * _EPS))
        keys_n = (kf * inv).astype(keys_ref.dtype)
        # Contract last dims of both operands directly (no .T / XLU transpose).
        raw = jax.lax.dot_general(
            qn_ref[...], keys_n,
            dimension_numbers=(((1,), (1,)), ((), ())),
            preferred_element_type=jnp.float32)                  # (Bp, tile)
        col_ids = jax.lax.broadcasted_iota(jnp.int32, (1, tile), 1) + k * tile
        # Mask padded / ragged-tail key rows BEFORE max/exp.
        s = jnp.where(col_ids < valid_count, scale * raw, -jnp.inf)
        m_new = jnp.maximum(m_ref[...], jnp.max(s, axis=-1, keepdims=True))
        alpha = jnp.exp(m_ref[...] - m_new)
        p = jnp.exp(s - m_new)
        l_ref[...] = alpha * l_ref[...] + jnp.sum(p, axis=-1, keepdims=True)
        m_ref[...] = m_new

    @pl.when(jnp.logical_and(d == 0, k < n_c_tiles))
    def _forward():      # anchor[:B] classified over all candidates
        online_update(ckeys_ref, n_cand)

    @pl.when(jnp.logical_and(d == 1, k < n_a_tiles))
    def _backward():     # candidates[:B] classified over all anchors
        online_update(akeys_ref, n_anchor)

    @pl.when(k == n_steps - 1)
    def _finalize():
        lse_ref[0] = m_ref[...] + jnp.log(l_ref[...])


def bidirectional_hard_negatives_ranking_loss(
    reps, *, scale=20.0, num_hard_negatives_dialogue=0
):
    """reps: list of (B, D) embedding matrices (output of the sentence encoder)."""
    nhd = num_hard_negatives_dialogue
    anchor_parts = reps[: nhd + 1]
    cand_parts = reps[nhd + 1:]
    anchor = anchor_parts[0] if len(anchor_parts) == 1 else jnp.concatenate(anchor_parts, 0)
    candidates = cand_parts[0] if len(cand_parts) == 1 else jnp.concatenate(cand_parts, 0)

    B = reps[0].shape[0]
    A, D = anchor.shape
    C = candidates.shape[0]
    emb_dtype = anchor.dtype
    key_bytes = jnp.dtype(emb_dtype).itemsize

    Dp = _round_up(D, 128)
    Bp = _round_up(B, 8)

    def _prep_keys(x):
        # Pad rows to x8 / hidden to x128 ONLY when misaligned; the aligned
        # production case (B % 8 == 0, D % 128 == 0) streams keys with zero
        # extra HBM copies, in their native dtype.
        rpad = _round_up(x.shape[0], 8) - x.shape[0]
        cpad = Dp - x.shape[1]
        if rpad or cpad:
            x = jnp.pad(x, ((0, rpad), (0, cpad)))
        return x

    def _prep_queries(x):
        return jnp.pad(x, ((0, Bp - x.shape[0]), (0, Dp - x.shape[1])))

    anchor_k = _prep_keys(anchor)        # backward-CE keys (native dtype)
    cand_k = _prep_keys(candidates)      # forward-CE keys  (native dtype)
    aq = _prep_queries(anchor[:B])       # forward-CE queries
    cq = _prep_queries(candidates[:B])   # backward-CE queries
    rows_a = anchor_k.shape[0]
    rows_c = cand_k.shape[0]

    # ---- generation-derived VMEM / tile budget --------------------------------
    vmem_cap = _vmem_capacity_bytes()
    vmem_limit = int(max(24 << 20, min(vmem_cap - (12 << 20), vmem_cap * 3 // 4)))
    query_foot = 5 * Bp * Dp * key_bytes + 16 * Bp      # q inputs (2 bufs each) + qn + m/l
    key_budget = max(2 << 20, vmem_limit - query_foot - (6 << 20))
    per_buf = max(512 << 10, min(12 << 20, key_budget // 4))   # 2 key streams x 2 buffers
    tile_rows = max(128, (per_buf // (Dp * key_bytes)) // 128 * 128)
    tile_a = min(tile_rows, rows_a)
    tile_c = min(tile_rows, rows_c)
    n_a_tiles = pl.cdiv(rows_a, tile_a)
    n_c_tiles = pl.cdiv(rows_c, tile_c)
    n_steps = max(n_a_tiles, n_c_tiles)

    kernel = functools.partial(
        _bidir_lse_kernel,
        n_anchor=A, n_cand=C,
        n_a_tiles=n_a_tiles, n_c_tiles=n_c_tiles, scale=float(scale),
    )

    cost = pl.CostEstimate(
        flops=2 * Bp * Dp * (rows_a + rows_c) + 3 * Dp * (rows_a + rows_c + 2 * Bp),
        transcendentals=Bp * (rows_a + rows_c) + (rows_a + rows_c + 2 * Bp),
        bytes_accessed=key_bytes * Dp * (rows_a + rows_c + 2 * Bp) + 2 * Bp * 4,
    )

    # During d == 0 only the candidate-key stream advances (anchor keys pinned to
    # block 0) and vice versa for d == 1, so each key matrix is DMA'd exactly once.
    akeys_spec = pl.BlockSpec(
        (tile_a, Dp),
        lambda d, k: (jnp.where(d == 1, jnp.minimum(k, n_a_tiles - 1), 0), 0))
    ckeys_spec = pl.BlockSpec(
        (tile_c, Dp),
        lambda d, k: (jnp.where(d == 0, jnp.minimum(k, n_c_tiles - 1), 0), 0))

    lse = pl.pallas_call(
        kernel,
        out_shape=jax.ShapeDtypeStruct((2, Bp, 1), jnp.float32),
        grid_spec=pltpu.PrefetchScalarGridSpec(
            num_scalar_prefetch=0,
            grid=(2, n_steps),
            in_specs=[
                # TODO(synk): pipeline_mode=pl.Buffered(1) on these two constant-index
                # query specs would drop one redundant VMEM buffer each.
                pl.BlockSpec((Bp, Dp), lambda d, k: (0, 0)),
                pl.BlockSpec((Bp, Dp), lambda d, k: (0, 0)),
                akeys_spec,
                ckeys_spec,
            ],
            out_specs=pl.BlockSpec((1, Bp, 1), lambda d, k: (d, 0, 0)),
            scratch_shapes=[
                pltpu.VMEM((Bp, Dp), emb_dtype),     # normalized queries (per direction)
                pltpu.VMEM((Bp, 1), jnp.float32),    # running max
                pltpu.VMEM((Bp, 1), jnp.float32),    # running sum-exp
            ],
        ),
        compiler_params=pltpu.CompilerParams(
            # Leading axis = the two CE directions -> split across TensorCores (v7x);
            # trailing axis = online-softmax reduction over key tiles.
            dimension_semantics=("parallel", "arbitrary"),
            vmem_limit_bytes=vmem_limit,
        ),
        cost_estimate=cost,
    )(aq, cq, anchor_k, cand_k)

    # Tiny plain-JAX epilogue: shared diagonal logit + mean over the batch rows.
    a_n = _normalize_rows(anchor[:B].astype(jnp.float32))
    c_n = _normalize_rows(candidates[:B].astype(jnp.float32))
    diag = scale * jnp.sum(a_n * c_n, axis=-1)          # (B,)
    lse_f = lse[0, :B, 0]
    lse_b = lse[1, :B, 0]
    return 0.5 * jnp.mean((lse_f - diag) + (lse_b - diag))


def _reference_loss(reps, *, scale=20.0, num_hard_negatives_dialogue=0):
    """Pure-JAX reference matching the PyTorch module."""
    anchor = jnp.concatenate(reps[: num_hard_negatives_dialogue + 1], axis=0)
    candidates = jnp.concatenate(reps[num_hard_negatives_dialogue + 1:], axis=0)
    B = reps[0].shape[0]
    a_n = anchor / jnp.maximum(jnp.linalg.norm(anchor, axis=-1, keepdims=True), 1e-12)
    c_n = candidates / jnp.maximum(
        jnp.linalg.norm(candidates, axis=-1, keepdims=True), 1e-12
    )
    scores = a_n @ c_n.T * scale
    labels = jnp.arange(B)

    def ce(logits, labels):
        lse = jax.scipy.special.logsumexp(logits, axis=-1)
        picked = logits[jnp.arange(logits.shape[0]), labels]
        return jnp.mean(lse - picked)

    forward_loss = ce(scores[:B, :], labels)
    backward_loss = ce(scores[:, :B].T, labels)
    return 0.5 * (forward_loss + backward_loss)


if __name__ == "__main__":
    key = jax.random.PRNGKey(0)
    B, D = 8, 32
    num_hard_negatives_dialogue = 1
    n_candidate_reps = 2  # positive + one candidate hard-negative group
    n_reps = (num_hard_negatives_dialogue + 1) + n_candidate_reps

    keys = jax.random.split(key, n_reps)
    # Deterministic "sentence embeddings" standing in for the SentenceTransformer output.
    reps = [jax.random.normal(k, (B, D), dtype=jnp.float32) for k in keys]

    loss = bidirectional_hard_negatives_ranking_loss(
        reps, scale=20.0, num_hard_negatives_dialogue=num_hard_negatives_dialogue
    )
    loss = jax.block_until_ready(loss)

    ref = jax.block_until_ready(
        _reference_loss(
            reps, scale=20.0, num_hard_negatives_dialogue=num_hard_negatives_dialogue
        )
    )
    assert jnp.isfinite(loss), "kernel produced non-finite loss"
    assert abs(float(loss) - float(ref)) < 1e-4 + 1e-4 * abs(float(ref)), (
        float(loss), float(ref))

    print("KERNEL_OK")
</pallas_src>

<mosaic_0001>
module attributes {stable_mosaic.version = 11 : i64} {
  func.func @_bidir_lse_kernel(%arg0: i32, %arg1: i32, %arg2: memref<8x128xf32, #tpu.memory_space<vmem>>, %arg3: memref<8x128xf32, #tpu.memory_space<vmem>>, %arg4: memref<16x128xf32, #tpu.memory_space<vmem>>, %arg5: memref<16x128xf32, #tpu.memory_space<vmem>>, %arg6: memref<1x8x1xf32, #tpu.memory_space<vmem>>, %arg7: memref<8x128xf32, #tpu.memory_space<vmem>>, %arg8: memref<8x1xf32, #tpu.memory_space<vmem>>, %arg9: memref<8x1xf32, #tpu.memory_space<vmem>>) attributes {dimension_semantics = [#tpu.dimension_semantics<parallel>, #tpu.dimension_semantics<arbitrary>], iteration_bounds = array<i64: 2, 1>, scalar_prefetch = 0 : i64, scratch_operands = 3 : i64, tpu.core_type = #tpu.core_type<tc>, window_params = [{pipeline_mode = #tpu.pipeline_mode<synchronous>, transform_indices = @transform_0, window_bounds = array<i64: 8, 128>}, {pipeline_mode = #tpu.pipeline_mode<synchronous>, transform_indices = @transform_1, window_bounds = array<i64: 8, 128>}, {transform_indices = @transform_2, window_bounds = array<i64: 16, 128>}, {transform_indices = @transform_3, window_bounds = array<i64: 16, 128>}, {transform_indices = @transform_4, window_bounds = array<i64: 1, 8, 1>}]} {
    %c0_i32 = arith.constant 0 : i32
    %0 = arith.cmpi eq, %arg1, %c0_i32 : i32
    %1 = arith.extui %0 : i1 to i32
    %c0_i32_0 = arith.constant 0 : i32
    %2 = arith.cmpi ne, %1, %c0_i32_0 : i32
    scf.if %2 {
      %cst = arith.constant 0xFF800000 : f32
      %26 = vector.broadcast %cst : f32 to vector<8x1xf32>
      %c0 = arith.constant 0 : index
      %c0_14 = arith.constant 0 : index
      %27 = vector.load %arg8[%c0, %c0_14] : memref<8x1xf32, #tpu.memory_space<vmem>>, vector<8x1xf32>
      tpu.vector_store %arg8[%c0, %c0_14], %26 {strides = array<i32>} : memref<8x1xf32, #tpu.memory_space<vmem>>, vector<8x1xf32>,
      %cst_15 = arith.constant 0.000000e+00 : f32
      %28 = vector.broadcast %cst_15 : f32 to vector<8x1xf32>
      %c0_16 = arith.constant 0 : index
      %c0_17 = arith.constant 0 : index
      %29 = vector.load %arg9[%c0_16, %c0_17] : memref<8x1xf32, #tpu.memory_space<vmem>>, vector<8x1xf32>
      tpu.vector_store %arg9[%c0_16, %c0_17], %28 {strides = array<i32>} : memref<8x1xf32, #tpu.memory_space<vmem>>, vector<8x1xf32>,
    } else {
    }
    %c0_i32_1 = arith.constant 0 : i32
    %3 = arith.cmpi eq, %arg1, %c0_i32_1 : i32
    %c0_i32_2 = arith.constant 0 : i32
    %4 = arith.cmpi eq, %arg0, %c0_i32_2 : i32
    %5 = arith.andi %3, %4 : i1
    %6 = arith.extui %5 : i1 to i32
    %c0_i32_3 = arith.constant 0 : i32
    %7 = arith.cmpi ne, %6, %c0_i32_3 : i32
    scf.if %7 {
      %c0 = arith.constant 0 : index
      %c0_14 = arith.constant 0 : index
      %26 = vector.load %arg2[%c0, %c0_14] : memref<8x128xf32, #tpu.memory_space<vmem>>, vector<8x128xf32>
      %27 = arith.mulf %26, %26 : vector<8x128xf32>
      %cst = arith.constant dense<0.000000e+00> : vector<8xf32>
      %28 = vector.multi_reduction <add>, %27, %cst [1] : vector<8x128xf32> to vector<8xf32>
      %29 = vector.shape_cast %28 : vector<8xf32> to vector<8x1xf32>
      %cst_15 = arith.constant 1.000000e-24 : f32
      %30 = vector.broadcast %cst_15 : f32 to vector<8x1xf32>
      %31 = arith.maximumf %29, %30 : vector<8x1xf32>
      %32 = math.rsqrt %31 : vector<8x1xf32>
      %33 = vector.broadcast %32 : vector<8x1xf32> to vector<8x128xf32>
      %34 = arith.mulf %26, %33 : vector<8x128xf32>
      %c0_16 = arith.constant 0 : index
      %c0_17 = arith.constant 0 : index
      %35 = vector.load %arg7[%c0_16, %c0_17] : memref<8x128xf32, #tpu.memory_space<vmem>>, vector<8x128xf32>
      tpu.vector_store %arg7[%c0_16, %c0_17], %34 {strides = array<i32>} : memref<8x128xf32, #tpu.memory_space<vmem>>, vector<8x128xf32>,
    } else {
    }
    %c0_i32_4 = arith.constant 0 : i32
    %8 = arith.cmpi eq, %arg1, %c0_i32_4 : i32
    %c1_i32 = arith.constant 1 : i32
    %9 = arith.cmpi eq, %arg0, %c1_i32 : i32
    %10 = arith.andi %8, %9 : i1
    %11 = arith.extui %10 : i1 to i32
    %c0_i32_5 = arith.constant 0 : i32
    %12 = arith.cmpi ne, %11, %c0_i32_5 : i32
    scf.if %12 {
      %c0 = arith.constant 0 : index
      %c0_14 = arith.constant 0 : index
      %26 = vector.load %arg3[%c0, %c0_14] : memref<8x128xf32, #tpu.memory_space<vmem>>, vector<8x128xf32>
      %27 = arith.mulf %26, %26 : vector<8x128xf32>
      %cst = arith.constant dense<0.000000e+00> : vector<8xf32>
      %28 = vector.multi_reduction <add>, %27, %cst [1] : vector<8x128xf32> to vector<8xf32>
      %29 = vector.shape_cast %28 : vector<8xf32> to vector<8x1xf32>
      %cst_15 = arith.constant 1.000000e-24 : f32
      %30 = vector.broadcast %cst_15 : f32 to vector<8x1xf32>
      %31 = arith.maximumf %29, %30 : vector<8x1xf32>
      %32 = math.rsqrt %31 : vector<8x1xf32>
      %33 = vector.broadcast %32 : vector<8x1xf32> to vector<8x128xf32>
      %34 = arith.mulf %26, %33 : vector<8x128xf32>
      %c0_16 = arith.constant 0 : index
      %c0_17 = arith.constant 0 : index
      %35 = vector.load %arg7[%c0_16, %c0_17] : memref<8x128xf32, #tpu.memory_space<vmem>>, vector<8x128xf32>
      tpu.vector_store %arg7[%c0_16, %c0_17], %34 {strides = array<i32>} : memref<8x128xf32, #tpu.memory_space<vmem>>, vector<8x128xf32>,
    } else {
    }
    %c0_i32_6 = arith.constant 0 : i32
    %13 = arith.cmpi eq, %arg0, %c0_i32_6 : i32
    %c1_i32_7 = arith.constant 1 : i32
    %14 = arith.cmpi slt, %arg1, %c1_i32_7 : i32
    %15 = arith.andi %13, %14 : i1
    %16 = arith.extui %15 : i1 to i32
    %c0_i32_8 = arith.constant 0 : i32
    %17 = arith.cmpi ne, %16, %c0_i32_8 : i32
    scf.if %17 {
      %c0 = arith.constant 0 : index
      %c0_14 = arith.constant 0 : index
      %26 = vector.load %arg5[%c0, %c0_14] : memref<16x128xf32, #tpu.memory_space<vmem>>, vector<16x128xf32>
      %27 = arith.mulf %26, %26 : vector<16x128xf32>
      %cst = arith.constant dense<0.000000e+00> : vector<16xf32>
      %28 = vector.multi_reduction <add>, %27, %cst [1] : vector<16x128xf32> to vector<16xf32>
      %29 = vector.shape_cast %28 : vector<16xf32> to vector<16x1xf32>
      %cst_15 = arith.constant 1.000000e-24 : f32
      %30 = vector.broadcast %cst_15 : f32 to vector<16x1xf32>
      %31 = arith.maximumf %29, %30 : vector<16x1xf32>
      %32 = math.rsqrt %31 : vector<16x1xf32>
      %33 = vector.broadcast %32 : vector<16x1xf32> to vector<16x128xf32>
      %34 = arith.mulf %26, %33 : vector<16x128xf32>
      %c0_16 = arith.constant 0 : index
      %c0_17 = arith.constant 0 : index
      %35 = vector.load %arg7[%c0_16, %c0_17] : memref<8x128xf32, #tpu.memory_space<vmem>>, vector<8x128xf32>
      %cst_18 = arith.constant dense<0.000000e+00> : vector<8x16xf32>
      %36 = tpu.matmul %35, %34, %cst_18 {dimension_numbers = #tpu.dot_dimension_numbers<[1], [1], [0], [0], [0, 0, 1, 0], [], []>} : vector<8x128xf32>, vector<16x128xf32>, vector<8x16xf32> -> vector<8x16xf32>
      %37 = tpu.iota {dimensions = array<i32: 1>} : vector<1x16xi32>
      %c16_i32 = arith.constant 16 : i32
      %38 = arith.muli %arg1, %c16_i32 : i32
      %39 = vector.broadcast %38 : i32 to vector<1x16xi32>
      %40 = arith.addi %37, %39 : vector<1x16xi32>
      %c16_i32_19 = arith.constant 16 : i32
      %41 = vector.broadcast %c16_i32_19 : i32 to vector<1x16xi32>
      %42 = arith.cmpi slt, %40, %41 : vector<1x16xi32>
      %cst_20 = arith.constant 2.000000e+01 : f32
      %43 = vector.broadcast %cst_20 : f32 to vector<8x16xf32>
      %44 = arith.mulf %43, %36 : vector<8x16xf32>
      %cst_21 = arith.constant 0xFF800000 : f32
      %45 = vector.shape_cast %42 : vector<1x16xi1> to vector<1x16xi1>
      %46 = vector.broadcast %45 : vector<1x16xi1> to vector<8x16xi1>
      %47 = vector.broadcast %cst_21 : f32 to vector<8x16xf32>
      %48 = arith.select %46, %44, %47 : vector<8x16xi1>, vector<8x16xf32>
      %c0_22 = arith.constant 0 : index
      %c0_23 = arith.constant 0 : index
      %49 = vector.load %arg8[%c0_22, %c0_23] : memref<8x1xf32, #tpu.memory_space<vmem>>, vector<8x1xf32>
      %cst_24 = arith.constant dense<0xFF800000> : vector<8xf32>
      %50 = vector.multi_reduction <maximumf>, %48, %cst_24 [1] : vector<8x16xf32> to vector<8xf32>
      %51 = vector.shape_cast %50 : vector<8xf32> to vector<8x1xf32>
      %52 = arith.maximumf %49, %51 : vector<8x1xf32>
      %c0_25 = arith.constant 0 : index
      %c0_26 = arith.constant 0 : index
      %53 = vector.load %arg8[%c0_25, %c0_26] : memref<8x1xf32, #tpu.memory_space<vmem>>, vector<8x1xf32>
      %54 = arith.subf %53, %52 : vector<8x1xf32>
      %55 = math.exp %54 : vector<8x1xf32>
      %56 = vector.broadcast %52 : vector<8x1xf32> to vector<8x16xf32>
      %57 = arith.subf %48, %56 : vector<8x16xf32>
      %58 = math.exp %57 : vector<8x16xf32>
      %c0_27 = arith.constant 0 : index
      %c0_28 = arith.constant 0 : index
      %59 = vector.load %arg9[%c0_27, %c0_28] : memref<8x1xf32, #tpu.memory_space<vmem>>, vector<8x1xf32>
      %60 = arith.mulf %55, %59 : vector<8x1xf32>
      %cst_29 = arith.constant dense<0.000000e+00> : vector<8xf32>
      %61 = vector.multi_reduction <add>, %58, %cst_29 [1] : vector<8x16xf32> to vector<8xf32>
      %62 = vector.shape_cast %61 : vector<8xf32> to vector<8x1xf32>
      %63 = arith.addf %60, %62 : vector<8x1xf32>
      %c0_30 = arith.constant 0 : index
      %c0_31 = arith.constant 0 : index
      %64 = vector.load %arg9[%c0_30, %c0_31] : memref<8x1xf32, #tpu.memory_space<vmem>>, vector<8x1xf32>
      tpu.vector_store %arg9[%c0_30, %c0_31], %63 {strides = array<i32>} : memref<8x1xf32, #tpu.memory_space<vmem>>, vector<8x1xf32>,
      %c0_32 = arith.constant 0 : index
      %c0_33 = arith.constant 0 : index
      %65 = vector.load %arg8[%c0_32, %c0_33] : memref<8x1xf32, #tpu.memory_space<vmem>>, vector<8x1xf32>
      tpu.vector_store %arg8[%c0_32, %c0_33], %52 {strides = array<i32>} : memref<8x1xf32, #tpu.memory_space<vmem>>, vector<8x1xf32>,
    } else {
    }
    %c1_i32_9 = arith.constant 1 : i32
    %18 = arith.cmpi eq, %arg0, %c1_i32_9 : i32
    %c1_i32_10 = arith.constant 1 : i32
    %19 = arith.cmpi slt, %arg1, %c1_i32_10 : i32
    %20 = arith.andi %18, %19 : i1
    %21 = arith.extui %20 : i1 to i32
    %c0_i32_11 = arith.constant 0 : i32
    %22 = arith.cmpi ne, %21, %c0_i32_11 : i32
    scf.if %22 {
      %c0 = arith.constant 0 : index
      %c0_14 = arith.constant 0 : index
      %26 = vector.load %arg4[%c0, %c0_14] : memref<16x128xf32, #tpu.memory_space<vmem>>, vector<16x128xf32>
      %27 = arith.mulf %26, %26 : vector<16x128xf32>
      %cst = arith.constant dense<0.000000e+00> : vector<16xf32>
      %28 = vector.multi_reduction <add>, %27, %cst [1] : vector<16x128xf32> to vector<16xf32>
      %29 = vector.shape_cast %28 : vector<16xf32> to vector<16x1xf32>
      %cst_15 = arith.constant 1.000000e-24 : f32
      %30 = vector.broadcast %cst_15 : f32 to vector<16x1xf32>
      %31 = arith.maximumf %29, %30 : vector<16x1xf32>
      %32 = math.rsqrt %31 : vector<16x1xf32>
      %33 = vector.broadcast %32 : vector<16x1xf32> to vector<16x128xf32>
      %34 = arith.mulf %26, %33 : vector<16x128xf32>
      %c0_16 = arith.constant 0 : index
      %c0_17 = arith.constant 0 : index
      %35 = vector.load %arg7[%c0_16, %c0_17] : memref<8x128xf32, #tpu.memory_space<vmem>>, vector<8x128xf32>
      %cst_18 = arith.constant dense<0.000000e+00> : vector<8x16xf32>
      %36 = tpu.matmul %35, %34, %cst_18 {dimension_numbers = #tpu.dot_dimension_numbers<[1], [1], [0], [0], [0, 0, 1, 0], [], []>} : vector<8x128xf32>, vector<16x128xf32>, vector<8x16xf32> -> vector<8x16xf32>
      %37 = tpu.iota {dimensions = array<i32: 1>} : vector<1x16xi32>
      %c16_i32 = arith.constant 16 : i32
      %38 = arith.muli %arg1, %c16_i32 : i32
      %39 = vector.broadcast %38 : i32 to vector<1x16xi32>
      %40 = arith.addi %37, %39 : vector<1x16xi32>
      %c16_i32_19 = arith.constant 16 : i32
      %41 = vector.broadcast %c16_i32_19 : i32 to vector<1x16xi32>
      %42 = arith.cmpi slt, %40, %41 : vector<1x16xi32>
      %cst_20 = arith.constant 2.000000e+01 : f32
      %43 = vector.broadcast %cst_20 : f32 to vector<8x16xf32>
      %44 = arith.mulf %43, %36 : vector<8x16xf32>
      %cst_21 = arith.constant 0xFF800000 : f32
      %45 = vector.shape_cast %42 : vector<1x16xi1> to vector<1x16xi1>
      %46 = vector.broadcast %45 : vector<1x16xi1> to vector<8x16xi1>
      %47 = vector.broadcast %cst_21 : f32 to vector<8x16xf32>
      %48 = arith.select %46, %44, %47 : vector<8x16xi1>, vector<8x16xf32>
      %c0_22 = arith.constant 0 : index
      %c0_23 = arith.constant 0 : index
      %49 = vector.load %arg8[%c0_22, %c0_23] : memref<8x1xf32, #tpu.memory_space<vmem>>, vector<8x1xf32>
      %cst_24 = arith.constant dense<0xFF800000> : vector<8xf32>
      %50 = vector.multi_reduction <maximumf>, %48, %cst_24 [1] : vector<8x16xf32> to vector<8xf32>
      %51 = vector.shape_cast %50 : vector<8xf32> to vector<8x1xf32>
      %52 = arith.maximumf %49, %51 : vector<8x1xf32>
      %c0_25 = arith.constant 0 : index
      %c0_26 = arith.constant 0 : index
      %53 = vector.load %arg8[%c0_25, %c0_26] : memref<8x1xf32, #tpu.memory_space<vmem>>, vector<8x1xf32>
      %54 = arith.subf %53, %52 : vector<8x1xf32>
      %55 = math.exp %54 : vector<8x1xf32>
      %56 = vector.broadcast %52 : vector<8x1xf32> to vector<8x16xf32>
      %57 = arith.subf %48, %56 : vector<8x16xf32>
      %58 = math.exp %57 : vector<8x16xf32>
      %c0_27 = arith.constant 0 : index
      %c0_28 = arith.constant 0 : index
      %59 = vector.load %arg9[%c0_27, %c0_28] : memref<8x1xf32, #tpu.memory_space<vmem>>, vector<8x1xf32>
      %60 = arith.mulf %55, %59 : vector<8x1xf32>
      %cst_29 = arith.constant dense<0.000000e+00> : vector<8xf32>
      %61 = vector.multi_reduction <add>, %58, %cst_29 [1] : vector<8x16xf32> to vector<8xf32>
      %62 = vector.shape_cast %61 : vector<8xf32> to vector<8x1xf32>
      %63 = arith.addf %60, %62 : vector<8x1xf32>
      %c0_30 = arith.constant 0 : index
      %c0_31 = arith.constant 0 : index
      %64 = vector.load %arg9[%c0_30, %c0_31] : memref<8x1xf32, #tpu.memory_space<vmem>>, vector<8x1xf32>
      tpu.vector_store %arg9[%c0_30, %c0_31], %63 {strides = array<i32>} : memref<8x1xf32, #tpu.memory_space<vmem>>, vector<8x1xf32>,
      %c0_32 = arith.constant 0 : index
      %c0_33 = arith.constant 0 : index
      %65 = vector.load %arg8[%c0_32, %c0_33] : memref<8x1xf32, #tpu.memory_space<vmem>>, vector<8x1xf32>
      tpu.vector_store %arg8[%c0_32, %c0_33], %52 {strides = array<i32>} : memref<8x1xf32, #tpu.memory_space<vmem>>, vector<8x1xf32>,
    } else {
    }
    %c0_i32_12 = arith.constant 0 : i32
    %23 = arith.cmpi eq, %arg1, %c0_i32_12 : i32
    %24 = arith.extui %23 : i1 to i32
    %c0_i32_13 = arith.constant 0 : i32
    %25 = arith.cmpi ne, %24, %c0_i32_13 : i32
    scf.if %25 {
      %c0 = arith.constant 0 : index
      %c0_14 = arith.constant 0 : index
      %26 = vector.load %arg8[%c0, %c0_14] : memref<8x1xf32, #tpu.memory_space<vmem>>, vector<8x1xf32>
      %c0_15 = arith.constant 0 : index
      %c0_16 = arith.constant 0 : index
      %27 = vector.load %arg9[%c0_15, %c0_16] : memref<8x1xf32, #tpu.memory_space<vmem>>, vector<8x1xf32>
      %28 = math.log %27 : vector<8x1xf32>
      %29 = arith.addf %26, %28 : vector<8x1xf32>
      %c0_17 = arith.constant 0 : index
      %c0_18 = arith.constant 0 : index
      %c0_19 = arith.constant 0 : index
      %30 = vector.load %arg6[%c0_17, %c0_18, %c0_19] : memref<1x8x1xf32, #tpu.memory_space<vmem>>, vector<1x8x1xf32>
      %31 = vector.shape_cast %30 : vector<1x8x1xf32> to vector<8x1xf32>
      %32 = vector.shape_cast %29 : vector<8x1xf32> to vector<1x8x1xf32>
      tpu.vector_store %arg6[%c0_17, %c0_18, %c0_19], %32 {strides = array<i32>} : memref<1x8x1xf32, #tpu.memory_space<vmem>>, vector<1x8x1xf32>,
    } else {
    }
    return
  }
  func.func @transform_0(%arg0: i32, %arg1: i32) -> (i32, i32) {
    %c0_i32 = arith.constant 0 : i32
    %c0_i32_0 = arith.constant 0 : i32
    %c0_i32_1 = arith.constant 0 : i32
    return %c0_i32, %c0_i32_0 : i32, i32
  }
  func.func @transform_1(%arg0: i32, %arg1: i32) -> (i32, i32) {
    %c0_i32 = arith.constant 0 : i32
    %c0_i32_0 = arith.constant 0 : i32
    %c0_i32_1 = arith.constant 0 : i32
    return %c0_i32, %c0_i32_0 : i32, i32
  }
  func.func @transform_2(%arg0: i32, %arg1: i32) -> (i32, i32) {
    %c1_i32 = arith.constant 1 : i32
    %0 = arith.cmpi eq, %arg0, %c1_i32 : i32
    %c0_i32 = arith.constant 0 : i32
    %1 = arith.minsi %arg1, %c0_i32 : i32
    %c0_i32_0 = arith.constant 0 : i32
    %2 = arith.select %0, %1, %c0_i32_0 : i32
    %c0_i32_1 = arith.constant 0 : i32
    %c0_i32_2 = arith.constant 0 : i32
    return %2, %c0_i32_1 : i32, i32
  }
  func.func @transform_3(%arg0: i32, %arg1: i32) -> (i32, i32) {
    %c0_i32 = arith.constant 0 : i32
    %0 = arith.cmpi eq, %arg0, %c0_i32 : i32
    %c0_i32_0 = arith.constant 0 : i32
    %1 = arith.minsi %arg1, %c0_i32_0 : i32
    %c0_i32_1 = arith.constant 0 : i32
    %2 = arith.select %0, %1, %c0_i32_1 : i32
    %c0_i32_2 = arith.constant 0 : i32
    %c0_i32_3 = arith.constant 0 : i32
    return %2, %c0_i32_2 : i32, i32
  }
  func.func @transform_4(%arg0: i32, %arg1: i32) -> (i32, i32, i32) {
    %c0_i32 = arith.constant 0 : i32
    %c0_i32_0 = arith.constant 0 : i32
    %c0_i32_1 = arith.constant 0 : i32
    return %arg0, %c0_i32, %c0_i32_0 : i32, i32, i32
  }
}

</mosaic_0001>

<llo_original>
// kernel: tpu_custom_call.1
$region0: #{tpu_custom_call.1}
  #allocation0 [shape = 'u32[]', space=smem, size = 0x4, offset = 0x4, fixed_abs, tag = 'smem constant byte address 0x4 - core index']
  #allocation1 [shape = 'u32[72,128]{1,0:T(1,128)}', space=vmem, size = 0x9000, scoped, tag = 'internal scratch']
  #allocation2 [shape = 'f32[8,128]{1,0:T(8,128)}', space=vmem, size = 0x1000, scoped, tag = 'scratch operand']
  #allocation3 [shape = 'f32[8,1]{1,0:T(8,128)}', space=vmem, size = 0x1000, scoped, tag = 'scratch operand']
  #allocation4 [shape = 'f32[8,1]{1,0:T(8,128)}', space=vmem, size = 0x1000, scoped, tag = 'scratch operand']
  %s0 = inlined_call_operand.hbm [shape: f32[8,128], index: 0, kind: input, shape index: {}]
  %s1 = inlined_call_operand.hbm [shape: f32[8,128], index: 1, kind: input, shape index: {}]
  %s2 = inlined_call_operand.hbm [shape: f32[16,128], index: 2, kind: input, shape index: {}]
  %s3 = inlined_call_operand.hbm [shape: f32[16,128], index: 3, kind: input, shape index: {}]
  %s4 = inlined_call_operand.vmem [shape: f32[2,8,1], index: 4, kind: output, shape index: {}]
  %s5 = sld [smem:[#allocation0]]
  $region89: #{tpu_custom_call.1} parent=0
    _
  %s7 = ssub.s32 1, %s5
  %s8 = scalar_select 0, %s7, %s5
  $region1: #{tpu_custom_call.1} parent=0
    #allocation5 [shape = 'u8[4096]{0}', space=vmem, size = 0x1000, scoped, tag = 'input window, operand 0, single buffered']
    #allocation6 [shape = 's32[2]{0}', space=sflag, size = 0x8, scoped, tag = 'scoped memory for tpu_custom_call.1']
    #allocation7 [shape = 'u8[4096]{0}', space=vmem, size = 0x1000, scoped, tag = 'input window, operand 1, single buffered']
    #allocation8 [shape = 's32[1]{0}', space=sflag, size = 0x4, scoped, tag = 'scoped memory for tpu_custom_call.1']
    #allocation9 [shape = 'u8[16384]{0}', space=vmem, size = 0x4000, scoped, tag = 'input window, operand 2']
    #allocation10 [shape = 'u8[16384]{0}', space=vmem, size = 0x4000, scoped, tag = 'input window, operand 3']
    %9 = vsyncpa [#allocation6], 0
    %10 = vsyncpa [#allocation8], 0
    loop: start=0, step=1, limit=4
    $region2: #{tpu_custom_call.1} parent=1 // loop_pre_header
      _
    $region3: #{tpu_custom_call.1} parent=1 // loop_header
      %s12 = sphi 0, %s16
      %p13 = scmp.ge.s32.totalorder %s12, 4
      %s19 = sphi 0, %s31
      %s20 = sphi 0, %s27
      %s21 = sphi 0, %s19
      %s22 = sphi 0, %s20
      %s23 = sphi 0, %s21
      %s24 = sphi 0, %s22
      %s32 = sphi 0, %s32
      %s34 = sphi 0, %s32
      %s35 = sphi 0, %s34
      %s49 = sphi 0, %s35
      %s53 = sphi 0, %s53
      %s55 = sphi 0, %s53
      %s56 = sphi 0, %s55
      %s70 = sphi 0, %s56
      %s84 = sphi 0, %s86
      %s87 = sphi 0, %s84
      %s88 = sphi 0, %s87
      %s104 = sphi 0, %s88
      %s118 = sphi 0, %s120
      %s121 = sphi 0, %s118
      %s122 = sphi 0, %s121
      %s138 = sphi 0, %s122
      %s144 = sphi 0, %s146
      %s147 = sphi 0, %s144
      %s148 = sphi 0, %s147
      %s164 = sphi 0, %s148
    $region4: #{tpu_custom_call.1} parent=1 // loop_header_branch
      %15 = sbr.rel (%p13) target = $region8
    $region5: #{tpu_custom_call.1} parent=1 // loop_body
      %s17 = ssub.s32 %s12, 1
      %s18 = ssub.s32 %s12, 2
      %s25 = sadd.s32 1, %s20
      %p26 = scmp.ge.s32.totalorder %s25, 1
      %s27 = scalar_select %p26, 0, %s25
      %s28 = sadd.s32 1, %s19
      %s29 = scalar_select %p26, %s28, %s19
      %p30 = scmp.ge.s32.totalorder %s29, 2
      %s31 = scalar_select %p30, 0, %s29
      %s33 = sadd.s32 %s32, 1
      %p36 = scmp.eq.s32.totalorder %s12, 1
      %p37 = scmp.ne.s32.totalorder %s32, %s34
      %p38 = scmp.eq.s32.totalorder %s12, 0
      %p39 = por %p37, %p38
      %p40 = scmp.ne.s32.totalorder %s32, %s34
      %p41 = scmp.eq.s32.totalorder %s17, 1
      %p42 = por %p40, %p41
      %p43 = scmp.ne.s32.totalorder %s34, %s35
      %p44 = scmp.eq.s32.totalorder %s17, 0
      %p45 = por %p43, %p44
      %p46 = scmp.ne.s32.totalorder %s34, %s35
      %p47 = scmp.eq.s32.totalorder %s18, 1
      %p48 = por %p46, %p47
      %p50 = scmp.ne.s32.totalorder %s35, %s49
      %p51 = scmp.eq.s32.totalorder %s18, 0
      %p52 = por %p50, %p51
      %s54 = sadd.s32 %s53, 1
      %p57 = scmp.eq.s32.totalorder %s12, 1
      %p58 = scmp.ne.s32.totalorder %s53, %s55
      %p59 = scmp.eq.s32.totalorder %s12, 0
      %p60 = por %p58, %p59
      %p61 = scmp.ne.s32.totalorder %s53, %s55
      %p62 = scmp.eq.s32.totalorder %s17, 1
      %p63 = por %p61, %p62
      %p64 = scmp.ne.s32.totalorder %s55, %s56
      %p65 = scmp.eq.s32.totalorder %s17, 0
      %p66 = por %p64, %p65
      %p67 = scmp.ne.s32.totalorder %s55, %s56
      %p68 = scmp.eq.s32.totalorder %s18, 1
      %p69 = por %p67, %p68
      %p71 = scmp.ne.s32.totalorder %s56, %s70
      %p72 = scmp.eq.s32.totalorder %s18, 0
      %p73 = por %p71, %p72
      %p74 = scmp.eq.s32.totalorder %s19, 1
      %p75 = scmp.lt.s32.totalorder %s20, 0
      %s76 = scalar_select %p75, %s20, 0
      %s77 = scalar_select %p74, %s76, 0
      %p78 = scmp.eq.s32.totalorder %s31, 1
      %p79 = scmp.lt.s32.totalorder %s27, 0
      %s80 = scalar_select %p79, %s27, 0
      %s81 = scalar_select %p78, %s80, 0
      %s82 = ssub.s32 %s77, %s81
      %p83 = scmp.eq.s32.totalorder %s82, 0
      %s85 = sadd.s32 %s84, 1
      %s86 = scalar_select %p83, %s84, %s85
      %p89 = pneg %p83
      %p90 = scmp.eq.s32.totalorder %s12, 1
      %p91 = por %p89, %p90
      %p92 = scmp.ne.s32.totalorder %s84, %s87
      %p93 = scmp.eq.s32.totalorder %s12, 0
      %p94 = por %p92, %p93
      %p95 = scmp.ne.s32.totalorder %s84, %s87
      %p96 = scmp.eq.s32.totalorder %s17, 1
      %p97 = por %p95, %p96
      %p98 = scmp.ne.s32.totalorder %s87, %s88
      %p99 = scmp.eq.s32.totalorder %s17, 0
      %p100 = por %p98, %p99
      %p101 = scmp.ne.s32.totalorder %s87, %s88
      %p102 = scmp.eq.s32.totalorder %s18, 1
      %p103 = por %p101, %p102
      %p105 = scmp.ne.s32.totalorder %s88, %s104
      %p106 = scmp.eq.s32.totalorder %s18, 0
      %p107 = por %p105, %p106
      %p108 = scmp.eq.s32.totalorder %s19, 0
      %p109 = scmp.lt.s32.totalorder %s20, 0
      %s110 = scalar_select %p109, %s20, 0
      %s111 = scalar_select %p108, %s110, 0
      %p112 = scmp.eq.s32.totalorder %s31, 0
      %p113 = scmp.lt.s32.totalorder %s27, 0
      %s114 = scalar_select %p113, %s27, 0
      %s115 = scalar_select %p112, %s114, 0
      %s116 = ssub.s32 %s111, %s115
      %p117 = scmp.eq.s32.totalorder %s116, 0
      %s119 = sadd.s32 %s118, 1
      %s120 = scalar_select %p117, %s118, %s119
      %p123 = pneg %p117
      %p124 = scmp.eq.s32.totalorder %s12, 1
      %p125 = por %p123, %p124
      %p126 = scmp.ne.s32.totalorder %s118, %s121
      %p127 = scmp.eq.s32.totalorder %s12, 0
      %p128 = por %p126, %p127
      %p129 = scmp.ne.s32.totalorder %s118, %s121
      %p130 = scmp.eq.s32.totalorder %s17, 1
      %p131 = por %p129, %p130
      %p132 = scmp.ne.s32.totalorder %s121, %s122
      %p133 = scmp.eq.s32.totalorder %s17, 0
      %p134 = por %p132, %p133
      %p135 = scmp.ne.s32.totalorder %s121, %s122
      %p136 = scmp.eq.s32.totalorder %s18, 1
      %p137 = por %p135, %p136
      %p139 = scmp.ne.s32.totalorder %s122, %s138
      %p140 = scmp.eq.s32.totalorder %s18, 0
      %p141 = por %p139, %p140
      %s142 = ssub.s32 %s19, %s31
      %p143 = scmp.eq.s32.totalorder %s142, 0
      %s145 = sadd.s32 %s144, 1
      %s146 = scalar_select %p143, %s144, %s145
      %p149 = pneg %p143
      %p150 = scmp.eq.s32.totalorder %s12, 1
      %p151 = por %p149, %p150
      %p152 = scmp.ne.s32.totalorder %s144, %s147
      %p153 = scmp.eq.s32.totalorder %s12, 0
      %p154 = por %p152, %p153
      %p155 = scmp.ne.s32.totalorder %s144, %s147
      %p156 = scmp.eq.s32.totalorder %s17, 1
      %p157 = por %p155, %p156
      %p158 = scmp.ne.s32.totalorder %s147, %s148
      %p159 = scmp.eq.s32.totalorder %s17, 0
      %p160 = por %p158, %p159
      %p161 = scmp.ne.s32.totalorder %s147, %s148
      %p162 = scmp.eq.s32.totalorder %s18, 1
      %p163 = por %p161, %p162
      %p165 = scmp.ne.s32.totalorder %s148, %s164
      %p166 = scmp.eq.s32.totalorder %s18, 0
      %p167 = por %p165, %p166
      %p168 = scmp.le.s32.totalorder 1, %s12
      %p169 = scmp.lt.s32.totalorder %s12, 3
      %p170 = pnand %p168, %p169
      %p171 = pneg %p170
      // Predicated region
      $region9: #{tpu_custom_call.1} parent=5 // pred_check
        _
      $region10: #{tpu_custom_call.1} parent=5 // pred_check_branch
        %173 = sbr.rel (%p170) target = $region12
      $region11: #{tpu_custom_call.1} parent=5 // pred_region
        %s174 = ssub.s32 %s12, 1
        // Predicated region
        $region13: #{tpu_custom_call.1} parent=11 // pred_check
          %p175 = pneg %p45
        $region14: #{tpu_custom_call.1} parent=11 // pred_check_branch
          %177 = sbr.rel (%p175) target = $region16
        $region15: #{tpu_custom_call.1} parent=11 // pred_region
          %179 = vsyncadd [#allocation6], 0
          %s181 = sshll.u32 %s0, 4
          %s182 = int_to_ptr.hbm [resolvable:$true] %s181
          %s183 = sshll.u32 [#allocation5], 4
          %s184 = int_to_ptr.vmem [resolvable:$true] %s183
          %186 = dma.hbm_to_vmem [thread:$0]  %s182, 128, %s184, [#allocation6]
        $region16: #{tpu_custom_call.1} parent=11 // pred_fallthru
          _
        // Predicated region
        $region17: #{tpu_custom_call.1} parent=11 // pred_check
          %p187 = pneg %p66
        $region18: #{tpu_custom_call.1} parent=11 // pred_check_branch
          %189 = sbr.rel (%p187) target = $region20
        $region19: #{tpu_custom_call.1} parent=11 // pred_region
          %191 = vsyncadd [#allocation8], 0
          %s193 = sshll.u32 %s1, 4
          %s194 = int_to_ptr.hbm [resolvable:$true] %s193
          %s195 = sshll.u32 [#allocation7], 4
          %s196 = int_to_ptr.vmem [resolvable:$true] %s195
          %198 = dma.hbm_to_vmem [thread:$0]  %s194, 128, %s196, [#allocation8]
        $region20: #{tpu_custom_call.1} parent=11 // pred_fallthru
          _
      $region12: #{tpu_custom_call.1} parent=5 // pred_fallthru
        _
      %p199 = scmp.lt.s32.totalorder %s12, 2
      // Predicated region
      $region21: #{tpu_custom_call.1} parent=5 // pred_check
        %p200 = pneg %p199
      $region22: #{tpu_custom_call.1} parent=5 // pred_check_branch
        %202 = sbr.rel (%p200) target = $region24
      $region23: #{tpu_custom_call.1} parent=5 // pred_region
        // Predicated region
        $region25: #{tpu_custom_call.1} parent=23 // pred_check
          %p203 = pneg %p94
        $region26: #{tpu_custom_call.1} parent=23 // pred_check_branch
          %205 = sbr.rel (%p203) target = $region28
        $region27: #{tpu_custom_call.1} parent=23 // pred_region
          %s206 = sand.u32 %s12, 1
          %s207 = scalar_lea.sflag [#allocation6], %s206
          %s208 = sand.u32 %s84, 1
          %s209 = smul.addr %s208, 16
          %s210 = scalar_lea.vmem [#allocation9], %s209
          %p211 = scmp.eq.s32.totalorder %s19, 1
          %p212 = scmp.lt.s32.totalorder %s20, 0
          %s213 = scalar_select %p212, %s20, 0
          %s214 = scalar_select %p211, %s213, 0
          %s215 = smul.u32 2, %s214
          %217 = vsyncadd %s207, 0
          %s218 = smul.addr %s215, 8
          %s219 = scalar_lea.hbm %s2, %s218
          %s220 = sshll.u32 %s219, 4
          %s221 = int_to_ptr.hbm [resolvable:$true] %s220
          %s222 = sshll.u32 %s210, 4
          %s223 = int_to_ptr.vmem [resolvable:$true] %s222
          %228 = dma.hbm_to_vmem [thread:$0]  %s221, 256, %s223, %s207, 128, 128, 8
        $region28: #{tpu_custom_call.1} parent=23 // pred_fallthru
          _
        // Predicated region
        $region29: #{tpu_custom_call.1} parent=23 // pred_check
          %p229 = pneg %p128
        $region30: #{tpu_custom_call.1} parent=23 // pred_check_branch
          %231 = sbr.rel (%p229) target = $region32
        $region31: #{tpu_custom_call.1} parent=23 // pred_region
          %s232 = sand.u32 %s12, 1
          %s233 = scalar_lea.sflag [#allocation6], %s232
          %s234 = sand.u32 %s118, 1
          %s235 = smul.addr %s234, 16
          %s236 = scalar_lea.vmem [#allocation10], %s235
          %p237 = scmp.eq.s32.totalorder %s19, 0
          %p238 = scmp.lt.s32.totalorder %s20, 0
          %s239 = scalar_select %p238, %s20, 0
          %s240 = scalar_select %p237, %s239, 0
          %s241 = smul.u32 2, %s240
          %243 = vsyncadd %s233, 0
          %s244 = smul.addr %s241, 8
          %s245 = scalar_lea.hbm %s3, %s244
          %s246 = sshll.u32 %s245, 4
          %s247 = int_to_ptr.hbm [resolvable:$true] %s246
          %s248 = sshll.u32 %s236, 4
          %s249 = int_to_ptr.vmem [resolvable:$true] %s248
          %254 = dma.hbm_to_vmem [thread:$0]  %s247, 256, %s249, %s233, 128, 128, 8
        $region32: #{tpu_custom_call.1} parent=23 // pred_fallthru
          _
      $region24: #{tpu_custom_call.1} parent=5 // pred_fallthru
        _
      %p255 = scmp.le.s32.totalorder 1, %s12
      %p256 = scmp.lt.s32.totalorder %s12, 3
      %p257 = pnand %p255, %p256
      %p258 = pneg %p257
      // Predicated region
      $region33: #{tpu_custom_call.1} parent=5 // pred_check
        _
      $region34: #{tpu_custom_call.1} parent=5 // pred_check_branch
        %260 = sbr.rel (%p257) target = $region36
      $region35: #{tpu_custom_call.1} parent=5 // pred_region
        %s261 = ssub.s32 %s12, 1
        // Predicated region
        $region37: #{tpu_custom_call.1} parent=35 // pred_check
          %p262 = pneg %p45
        $region38: #{tpu_custom_call.1} parent=35 // pred_check_branch
          %264 = sbr.rel (%p262) target = $region40
        $region39: #{tpu_custom_call.1} parent=35 // pred_region
          %266 = dma.done [#allocation6], 128
        $region40: #{tpu_custom_call.1} parent=35 // pred_fallthru
          _
        // Predicated region
        $region41: #{tpu_custom_call.1} parent=35 // pred_check
          %p267 = pneg %p66
        $region42: #{tpu_custom_call.1} parent=35 // pred_check_branch
          %269 = sbr.rel (%p267) target = $region44
        $region43: #{tpu_custom_call.1} parent=35 // pred_region
          %271 = dma.done [#allocation8], 128
        $region44: #{tpu_custom_call.1} parent=35 // pred_fallthru
          _
        %s272 = sand.u32 %s17, 1
        %s273 = scalar_lea.sflag [#allocation6], %s272
        %s274 = sand.u32 %s87, 1
        %s275 = smul.addr %s274, 16
        %s276 = scalar_lea.vmem [#allocation9], %s275
        // Predicated region
        $region45: #{tpu_custom_call.1} parent=35 // pred_check
          %p277 = pneg %p100
        $region46: #{tpu_custom_call.1} parent=35 // pred_check_branch
          %279 = sbr.rel (%p277) target = $region48
        $region47: #{tpu_custom_call.1} parent=35 // pred_region
          %281 = dma.done %s273, 256
        $region48: #{tpu_custom_call.1} parent=35 // pred_fallthru
          _
        %s282 = sand.u32 %s17, 1
        %s283 = scalar_lea.sflag [#allocation6], %s282
        %s284 = sand.u32 %s121, 1
        %s285 = smul.addr %s284, 16
        %s286 = scalar_lea.vmem [#allocation10], %s285
        // Predicated region
        $region49: #{tpu_custom_call.1} parent=35 // pred_check
          %p287 = pneg %p134
        $region50: #{tpu_custom_call.1} parent=35 // pred_check_branch
          %289 = sbr.rel (%p287) target = $region52
        $region51: #{tpu_custom_call.1} parent=35 // pred_region
          %291 = dma.done %s283, 256
        $region52: #{tpu_custom_call.1} parent=35 // pred_fallthru
          _
        %p292 = pneg %p45
        %p293 = pneg %p42
        %p294 = pneg %p66
        %p295 = pneg %p63
        %s296 = sand.u32 %s17, 1
        %s297 = scalar_lea.sflag [#allocation6], %s296
        %s298 = sand.u32 %s87, 1
        %s299 = smul.addr %s298, 16
        %s300 = scalar_lea.vmem [#allocation9], %s299
        %p301 = pneg %p100
        %p302 = pneg %p97
        %s303 = sand.u32 %s17, 1
        %s304 = scalar_lea.sflag [#allocation6], %s303
        %s305 = sand.u32 %s121, 1
        %s306 = smul.addr %s305, 16
        %s307 = scalar_lea.vmem [#allocation10], %s306
        %p308 = pneg %p134
        %p309 = pneg %p131
        %p310 = pneg %p160
        %p311 = pneg %p157
        %p312 = scmp.lt.s32.totalorder %s21, 1
        %s313 = scalar_select %p312, %s21, 1
        %s314 = smul.addr %s313, 8
        %s315 = scalar_lea.vmem %s4, %s314
        %p316 = scmp.eq.s32.totalorder %s21, 1
        %p317 = scmp.lt.s32.totalorder %s22, 0
        %s318 = scalar_select %p317, %s22, 0
        %s319 = scalar_select %p316, %s318, 0
        %s320 = smul.u32 2, %s319
        %p321 = scmp.eq.s32.totalorder %s21, 0
        %p322 = scmp.lt.s32.totalorder %s22, 0
        %s323 = scalar_select %p322, %s22, 0
        %s324 = scalar_select %p321, %s323, 0
        %s325 = smul.u32 2, %s324
        %p326 = scmp.lt.s32.totalorder %s21, 1
        %s327 = scalar_select %p326, %s21, 1
        %s328 = smul.addr %s327, 8
        %s329 = scalar_lea.vmem %s4, %s328
        %p330 = scmp.eq.s32.totalorder %s22, 0
        // Predicated region
        $region53: #{tpu_custom_call.1} parent=35 // pred_check
          %p331 = pneg %p330
        $region54: #{tpu_custom_call.1} parent=35 // pred_check_branch
          %333 = sbr.rel (%p331) target = $region56
        $region55: #{tpu_custom_call.1} parent=35 // pred_region
          %vm334 = vcmask 7168
          %335 = vst.msk [vmem:[#allocation3] sm:$0xff] %vm334, -inf
          %336 = vst.msk [vmem:[#allocation4] sm:$0xff] %vm334, 0.0
        $region56: #{tpu_custom_call.1} parent=35 // pred_fallthru
          _
        %p337 = scmp.eq.s32.totalorder %s21, 0
        %p338 = pnand %p330, %p337
        %p339 = pneg %p338
        // Predicated region
        $region57: #{tpu_custom_call.1} parent=35 // pred_check
          _
        $region58: #{tpu_custom_call.1} parent=35 // pred_check_branch
          %341 = sbr.rel (%p338) target = $region60
        $region59: #{tpu_custom_call.1} parent=35 // pred_region
          %v342 = vld [vmem:[#allocation5] sm:$0xff]
          %v343 = vmul.f32 %v342, %v342
          %344 = vadd.xlane.f32.xlu0 %v343
          %v345 = vpop.xlane.xlu0 %344
          %v346 = vmax.f32 %v345, 1e-24
          %v347 = vrsqrt.pop %v346
          %v348 = vmul.f32 %v347, %v346
          %v349 = vmul.f32 %v348, %v347
          %v350 = vmul.f32 0.5, %v349
          %v351 = vsub.f32 1.5, %v350
          %v352 = vmul.f32 %v347, %v351
          %vm353 = vweird.f32 %v346
          %vm354 = vweird.f32 %v347
          %vm355 = vmor %vm353, %vm354
          %v356 = vsel %vm355, %v347, %v352
          %v357 = vmul.f32 %v342, %v356
          %358 = vst [vmem:[#allocation2] sm:$0xff] %v357
        $region60: #{tpu_custom_call.1} parent=35 // pred_fallthru
          _
        %p359 = scmp.eq.s32.totalorder %s21, 1
        %p360 = pnand %p330, %p359
        %p361 = pneg %p360
        // Predicated region
        $region61: #{tpu_custom_call.1} parent=35 // pred_check
          _
        $region62: #{tpu_custom_call.1} parent=35 // pred_check_branch
          %363 = sbr.rel (%p360) target = $region64
        $region63: #{tpu_custom_call.1} parent=35 // pred_region
          %v364 = vld [vmem:[#allocation7] sm:$0xff]
          %v365 = vmul.f32 %v364, %v364
          %366 = vadd.xlane.f32.xlu0 %v365
          %v367 = vpop.xlane.xlu0 %366
          %v368 = vmax.f32 %v367, 1e-24
          %v369 = vrsqrt.pop %v368
          %v370 = vmul.f32 %v369, %v368
          %v371 = vmul.f32 %v370, %v369
          %v372 = vmul.f32 0.5, %v371
          %v373 = vsub.f32 1.5, %v372
          %v374 = vmul.f32 %v369, %v373
          %vm375 = vweird.f32 %v368
          %vm376 = vweird.f32 %v369
          %vm377 = vmor %vm375, %vm376
          %v378 = vsel %vm377, %v369, %v374
          %v379 = vmul.f32 %v364, %v378
          %380 = vst [vmem:[#allocation2] sm:$0xff] %v379
        $region64: #{tpu_custom_call.1} parent=35 // pred_fallthru
          _
        %p381 = scmp.lt.s32.totalorder %s22, 1
        %p382 = pnand %p337, %p381
        %p383 = pneg %p382
        // Predicated region
        $region65: #{tpu_custom_call.1} parent=35 // pred_check
          _
        $region66: #{tpu_custom_call.1} parent=35 // pred_check_branch
          %385 = sbr.rel (%p382) target = $region68
        $region67: #{tpu_custom_call.1} parent=35 // pred_region
          %v386 = vld [vmem:[%s286] sm:$0xff]
          %v387 = vld [vmem:[%s286 + $0x8] sm:$0xff]
          %v388 = vmul.f32 %v386, %v386
          %v389 = vmul.f32 %v387, %v387
          %390 = vadd.xlane.f32.xlu0 %v388
          %v391 = vpop.xlane.xlu0 %390
          %392 = vadd.xlane.f32.xlu0 %v389
          %v393 = vpop.xlane.xlu0 %392
          %v394 = vmax.f32 %v391, 1e-24
          %v395 = vmax.f32 %v393, 1e-24
          %v396 = vrsqrt.pop %v394
          %v397 = vmul.f32 %v396, %v394
          %v398 = vmul.f32 %v397, %v396
          %v399 = vmul.f32 0.5, %v398
          %v400 = vsub.f32 1.5, %v399
          %v401 = vmul.f32 %v396, %v400
          %vm402 = vweird.f32 %v394
          %vm403 = vweird.f32 %v396
          %vm404 = vmor %vm402, %vm403
          %v405 = vsel %vm404, %v396, %v401
          %v406 = vrsqrt.pop %v395
          %v407 = vmul.f32 %v406, %v395
          %v408 = vmul.f32 %v407, %v406
          %v409 = vmul.f32 0.5, %v408
          %v410 = vsub.f32 1.5, %v409
          %v411 = vmul.f32 %v406, %v410
          %vm412 = vweird.f32 %v395
          %vm413 = vweird.f32 %v406
          %vm414 = vmor %vm412, %vm413
          %v415 = vsel %vm414, %v406, %v411
          %v416 = vmul.f32 %v386, %v405
          %v417 = vmul.f32 %v387, %v415
          %v418 = vld [vmem:[#allocation2] sm:$0xff]
          %419 = vmatpush.xpose.msra.mxu0 0.0
          %420 = vmatpush.xpose.msra.mxu0 0.0
          %421 = vmatpush.xpose.msra.mxu0 0.0
          %422 = vmatpush.xpose.msra.mxu0 0.0
          %423 = vmatpush.xpose.msra.mxu0 0.0
          %424 = vmatpush.xpose.msra.mxu0 0.0
          %425 = vmatpush.xpose.msra.mxu0 0.0
          %426 = vmatpush.xpose.msra.mxu0 0.0
          %427 = vmatpush.xpose.msra.mxu0 0.0
          %428 = vmatpush.xpose.msra.mxu0 0.0
          %429 = vmatpush.xpose.msra.mxu0 0.0
          %430 = vmatpush.xpose.msra.mxu0 0.0
          %431 = vmatpush.xpose.msra.mxu0 0.0
          %432 = vmatpush.xpose.msra.mxu0 0.0
          %433 = vmatpush.xpose.msra.mxu0 %v417
          %434 = vmatpush.xpose.msra.mxu0 %v416
          %435 = vmatmul.f32.gmra.mxu0 %v418
          %v436 = vpop.f32.mrf.mxu0
          %v437 = vadd.f32 0.0, %v436
          %438 = vdwg.mxu0
          %v439 = vlaneseq
          %v440 = vand.u32 %v439, 127
          %s441 = smul.u32 %s22, 16
          %v442 = vstv %s441
          %v443 = vadd.s32 %v440, %v442
          %vm444 = vcmp.lt.s32.totalorder %v443, 16
          %v445 = vmul.f32 %v437, 20.0
          %v446 = vsel %vm444, 1, 0
          %vm447 = vcmp.eq.s32.totalorder %v446, 1
          %v448 = vsel %vm447, %v445, -inf
          %v449 = vld [vmem:[#allocation3] sm:$0xff]
          %vm450 = vcmask 130048
          %v451 = vsel %vm450, %v448, -inf
          %452 = vmax.xlane.f32.xlu0 %v451
          %v453 = vpop.xlane.xlu0 %452
          %v454 = vmax.f32 %v449, %v453
          %v455 = vsub.f32 %v449, %v454
          %v456 = vmul.f32 %v455, 1.442695
          %v457 = vpow.pop %v456
          %459 = vset.pattern.permute.xlu0 0
          %460 = vperm.xlu0 %459, %v454
          %v461 = vpop.permute.xlu0 %460
          %v463 = vsub.f32 %v448, %v461
          %v464 = vmul.f32 %v463, 1.442695
          %v465 = vpow.pop %v464
          %v466 = vld [vmem:[#allocation4] sm:$0xff]
          %v467 = vmul.f32 %v457, %v466
          %v468 = vsel %vm450, %v465, 0.0
          %469 = vadd.xlane.f32.xlu0 %v468
          %v470 = vpop.xlane.xlu0 %469
          %v471 = vadd.f32 %v467, %v470
          %vm472 = vcmask 7168
          %473 = vst.msk [vmem:[#allocation4] sm:$0xff] %vm472, %v471
          %474 = vst.msk [vmem:[#allocation3] sm:$0xff] %vm472, %v454
        $region68: #{tpu_custom_call.1} parent=35 // pred_fallthru
          _
        %p475 = pnand %p359, %p381
        %p476 = pneg %p475
        // Predicated region
        $region69: #{tpu_custom_call.1} parent=35 // pred_check
          _
        $region70: #{tpu_custom_call.1} parent=35 // pred_check_branch
          %478 = sbr.rel (%p475) target = $region72
        $region71: #{tpu_custom_call.1} parent=35 // pred_region
          %v479 = vld [vmem:[%s276] sm:$0xff]
          %v480 = vld [vmem:[%s276 + $0x8] sm:$0xff]
          %v481 = vmul.f32 %v479, %v479
          %v482 = vmul.f32 %v480, %v480
          %483 = vadd.xlane.f32.xlu0 %v481
          %v484 = vpop.xlane.xlu0 %483
          %485 = vadd.xlane.f32.xlu0 %v482
          %v486 = vpop.xlane.xlu0 %485
          %v487 = vmax.f32 %v484, 1e-24
          %v488 = vmax.f32 %v486, 1e-24
          %v489 = vrsqrt.pop %v487
          %v490 = vmul.f32 %v489, %v487
          %v491 = vmul.f32 %v490, %v489
          %v492 = vmul.f32 0.5, %v491
          %v493 = vsub.f32 1.5, %v492
          %v494 = vmul.f32 %v489, %v493
          %vm495 = vweird.f32 %v487
          %vm496 = vweird.f32 %v489
          %vm497 = vmor %vm495, %vm496
          %v498 = vsel %vm497, %v489, %v494
          %v499 = vrsqrt.pop %v488
          %v500 = vmul.f32 %v499, %v488
          %v501 = vmul.f32 %v500, %v499
          %v502 = vmul.f32 0.5, %v501
          %v503 = vsub.f32 1.5, %v502
          %v504 = vmul.f32 %v499, %v503
          %vm505 = vweird.f32 %v488
          %vm506 = vweird.f32 %v499
          %vm507 = vmor %vm505, %vm506
          %v508 = vsel %vm507, %v499, %v504
          %v509 = vmul.f32 %v479, %v498
          %v510 = vmul.f32 %v480, %v508
          %v511 = vld [vmem:[#allocation2] sm:$0xff]
          %512 = vmatpush.xpose.msra.mxu0 0.0
          %513 = vmatpush.xpose.msra.mxu0 0.0
          %514 = vmatpush.xpose.msra.mxu0 0.0
          %515 = vmatpush.xpose.msra.mxu0 0.0
          %516 = vmatpush.xpose.msra.mxu0 0.0
          %517 = vmatpush.xpose.msra.mxu0 0.0
          %518 = vmatpush.xpose.msra.mxu0 0.0
          %519 = vmatpush.xpose.msra.mxu0 0.0
          %520 = vmatpush.xpose.msra.mxu0 0.0
          %521 = vmatpush.xpose.msra.mxu0 0.0
          %522 = vmatpush.xpose.msra.mxu0 0.0
          %523 = vmatpush.xpose.msra.mxu0 0.0
          %524 = vmatpush.xpose.msra.mxu0 0.0
          %525 = vmatpush.xpose.msra.mxu0 0.0
          %526 = vmatpush.xpose.msra.mxu0 %v510
          %527 = vmatpush.xpose.msra.mxu0 %v509
          %528 = vmatmul.f32.gmra.mxu0 %v511
          %v529 = vpop.f32.mrf.mxu0
          %v530 = vadd.f32 0.0, %v529
          %531 = vdwg.mxu0
          %v532 = vlaneseq
          %v533 = vand.u32 %v532, 127
          %s534 = smul.u32 %s22, 16
          %v535 = vstv %s534
          %v536 = vadd.s32 %v533, %v535
          %vm537 = vcmp.lt.s32.totalorder %v536, 16
          %v538 = vmul.f32 %v530, 20.0
          %v539 = vsel %vm537, 1, 0
          %vm540 = vcmp.eq.s32.totalorder %v539, 1
          %v541 = vsel %vm540, %v538, -inf
          %v542 = vld [vmem:[#allocation3] sm:$0xff]
          %vm543 = vcmask 130048
          %v544 = vsel %vm543, %v541, -inf
          %545 = vmax.xlane.f32.xlu0 %v544
          %v546 = vpop.xlane.xlu0 %545
          %v547 = vmax.f32 %v542, %v546
          %v548 = vsub.f32 %v542, %v547
          %v549 = vmul.f32 %v548, 1.442695
          %v550 = vpow.pop %v549
          %552 = vset.pattern.permute.xlu0 0
          %553 = vperm.xlu0 %552, %v547
          %v554 = vpop.permute.xlu0 %553
          %v556 = vsub.f32 %v541, %v554
          %v557 = vmul.f32 %v556, 1.442695
          %v558 = vpow.pop %v557
          %v559 = vld [vmem:[#allocation4] sm:$0xff]
          %v560 = vmul.f32 %v550, %v559
          %v561 = vsel %vm543, %v558, 0.0
          %562 = vadd.xlane.f32.xlu0 %v561
          %v563 = vpop.xlane.xlu0 %562
          %v564 = vadd.f32 %v560, %v563
          %vm565 = vcmask 7168
          %566 = vst.msk [vmem:[#allocation4] sm:$0xff] %vm565, %v564
          %567 = vst.msk [vmem:[#allocation3] sm:$0xff] %vm565, %v547
        $region72: #{tpu_custom_call.1} parent=35 // pred_fallthru
          _
        // Predicated region
        $region73: #{tpu_custom_call.1} parent=35 // pred_check
          %p568 = pneg %p330
        $region74: #{tpu_custom_call.1} parent=35 // pred_check_branch
          %570 = sbr.rel (%p568) target = $region76
        $region75: #{tpu_custom_call.1} parent=35 // pred_region
          %v571 = vld [vmem:[#allocation3] sm:$0xff]
          %v572 = vld [vmem:[#allocation4] sm:$0xff]
          %v573 = vlog2.pop %v572
          %v574 = vmul.f32 %v573, 0.6931472
          %v575 = vadd.f32 %v571, %v574
          %vm576 = vcmask 7168
          %577 = vst.msk [vmem:[%s329] sm:$0xff] %vm576, %v575
        $region76: #{tpu_custom_call.1} parent=35 // pred_fallthru
          _
        %p578 = scmp.lt.s32.totalorder %s21, 1
        %s579 = scalar_select %p578, %s21, 1
        %s580 = smul.addr %s579, 8
        %s581 = scalar_lea.vmem %s4, %s580
        // Predicated region
        $region77: #{tpu_custom_call.1} parent=35 // pred_check
          %p582 = pneg %p157
        $region78: #{tpu_custom_call.1} parent=35 // pred_check_branch
          %584 = sbr.rel (%p582) target = $region80
        $region79: #{tpu_custom_call.1} parent=35 // pred_region
          _
        $region80: #{tpu_custom_call.1} parent=35 // pred_fallthru
          _
      $region36: #{tpu_custom_call.1} parent=5 // pred_fallthru
        _
      %p585 = scmp.le.s32.totalorder 2, %s12
      // Predicated region
      $region81: #{tpu_custom_call.1} parent=5 // pred_check
        %p586 = pneg %p585
      $region82: #{tpu_custom_call.1} parent=5 // pred_check_branch
        %588 = sbr.rel (%p586) target = $region84
      $region83: #{tpu_custom_call.1} parent=5 // pred_region
        %s589 = ssub.s32 %s12, 2
        // Predicated region
        $region85: #{tpu_custom_call.1} parent=83 // pred_check
          %p590 = pneg %p163
        $region86: #{tpu_custom_call.1} parent=83 // pred_check_branch
          %592 = sbr.rel (%p590) target = $region88
        $region87: #{tpu_custom_call.1} parent=83 // pred_region
          %p593 = scmp.lt.s32.totalorder %s23, 1
          %s594 = scalar_select %p593, %s23, 1
          %s595 = smul.addr %s594, 8
          %s596 = scalar_lea.vmem %s4, %s595
        $region88: #{tpu_custom_call.1} parent=83 // pred_fallthru
          _
      $region84: #{tpu_custom_call.1} parent=5 // pred_fallthru
        _
    $region6: #{tpu_custom_call.1} parent=1 // loop_footer
      %s16 = sadd.s32 1, %s12
    $region7: #{tpu_custom_call.1} parent=1 // loop_footer_branch
      %11 = sbr.rel target = $region3
    $region8: #{tpu_custom_call.1} parent=1 // loop_exit
      _
    %597 = vsyncpa [#allocation6], 1
    %s598 = scalar_lea.sflag [#allocation6], 1
    %599 = vsyncpa %s598, 1
    %600 = vsyncpa [#allocation8], 1

</llo_original>
